<compile_context>
chip_gen: v6e
topology: v6e:2x2x1
jax: 0.10.0
libtpu: 0.0.40
codegen_flags: <defaults>
</compile_context>

<pallas_src>
import jax
import jax.numpy as jnp
from jax.experimental import pallas as pl
from jax.experimental.pallas import tpu as pltpu


# ----------------------------------------------------------------------------
# Fused Pallas kernel (one batch element per grid step)
#   dow_ref  : [1, L, 1] int32   day-of-week indices (already mod 7)
#   tod_ref  : [1, L, 1] int32   time-of-day indices (already mod 288)
#   w1t_ref  : [7+T, s_order]    tmlp1 weight, transposed
#   b1_ref   : [1, s_order]      tmlp1 bias
#   w2_ref   : [t_order, L]      tmlp2 weight
#   b2_ref   : [t_order, 1]      tmlp2 bias
#   se_ref   : [num_nodes, 10]   SE parameter
#   ws1_ref  : [t_order, num_nodes], bs1_ref: [t_order, 1]   smlp1
#   ws2t_ref : [10, s_order],        bs2_ref: [1, s_order]   smlp2 (transposed)
#   o_ref    : [1, t_order, s_order] output tile for this batch element
# ----------------------------------------------------------------------------
def _st_embedding_kernel(dow_ref, tod_ref, w1t_ref, b1_ref, w2_ref, b2_ref,
                         se_ref, ws1_ref, bs1_ref, ws2t_ref, bs2_ref, o_ref):
    L = dow_ref.shape[1]
    C = w1t_ref.shape[0]                     # 7 + T = 295

    # Fused one-hot(dayofweek) ++ one-hot(timeofday), built in-register (VPU).
    lane = jax.lax.broadcasted_iota(jnp.int32, (L, C), 1)
    dow = dow_ref[0]                         # [L, 1]
    tod = tod_ref[0]                         # [L, 1]
    onehot = jnp.logical_or(lane == dow, lane == tod + 7).astype(jnp.float32)

    # tmlp1: 1x1 conv over the 295 one-hot channels -> single MXU matmul + ReLU.
    h1 = jax.nn.relu(
        jnp.dot(onehot, w1t_ref[...], preferred_element_type=jnp.float32)
        + b1_ref[...])                       # [L, s_order]

    # tmlp2: 1x1 conv over the L channels -> single MXU matmul + ReLU.
    h2 = jax.nn.relu(
        jnp.dot(w2_ref[...], h1, preferred_element_type=jnp.float32)
        + b2_ref[...])                       # [t_order, s_order]

    # SE path (batch-invariant): smlp1 -> ReLU -> smlp2 -> ReLU.
    # Recomputed per grid step (two tiny matmuls) so the batch axis can stay
    # "parallel" across cores without a shared/ordered scratch dependency.
    s1 = jax.nn.relu(
        jnp.dot(ws1_ref[...], se_ref[...], preferred_element_type=jnp.float32)
        + bs1_ref[...])                      # [t_order, 10]
    s2 = jax.nn.relu(
        jnp.dot(s1, ws2t_ref[...], preferred_element_type=jnp.float32)
        + bs2_ref[...])                      # [t_order, s_order]

    # STE = relu(SE + TE), single store of this batch's tile.
    o_ref[0] = jax.nn.relu(s2 + h2)


# ----------------------------------------------------------------------------
# Wrapper: layout plumbing + one fused pallas_call
# ----------------------------------------------------------------------------
def st_embedding_forward(TE, SE_param, params, T=288):
    B, L, _ = TE.shape
    s_order = params["w_t1"].shape[0]        # w_t1: [s_order, 7 + T]
    t_order = params["w_t2"].shape[0]        # w_t2: [t_order, L]
    num_nodes = SE_param.shape[0]
    C = 7 + T

    # Integer indices only go to the kernel; the one-hot is built in-kernel.
    dow = (TE[..., 0].astype(jnp.int32) % 7).reshape(B, L, 1)
    tod = (TE[..., 1].astype(jnp.int32) % 288).reshape(B, L, 1)

    w1t = jnp.transpose(params["w_t1"])      # [C, s_order]
    b1 = params["b_t1"][None, :]             # [1, s_order]
    w2 = params["w_t2"]                      # [t_order, L]
    b2 = params["b_t2"][:, None]             # [t_order, 1]
    ws1 = params["w_s1"]                     # [t_order, num_nodes]
    bs1 = params["b_s1"][:, None]            # [t_order, 1]
    ws2t = jnp.transpose(params["w_s2"])     # [10, s_order]
    bs2 = params["b_s2"][None, :]            # [1, s_order]

    grid_spec = pltpu.PrefetchScalarGridSpec(
        num_scalar_prefetch=0,
        grid=(B,),
        in_specs=[
            pl.BlockSpec((1, L, 1), lambda b: (b, 0, 0)),           # dow
            pl.BlockSpec((1, L, 1), lambda b: (b, 0, 0)),           # tod
            pl.BlockSpec((C, s_order), lambda b: (0, 0)),           # w1t
            pl.BlockSpec((1, s_order), lambda b: (0, 0)),           # b1
            pl.BlockSpec((t_order, L), lambda b: (0, 0)),           # w2
            pl.BlockSpec((t_order, 1), lambda b: (0, 0)),           # b2
            pl.BlockSpec((num_nodes, 10), lambda b: (0, 0)),        # SE
            pl.BlockSpec((t_order, num_nodes), lambda b: (0, 0)),   # ws1
            pl.BlockSpec((t_order, 1), lambda b: (0, 0)),           # bs1
            pl.BlockSpec((10, s_order), lambda b: (0, 0)),          # ws2t
            pl.BlockSpec((1, s_order), lambda b: (0, 0)),           # bs2
        ],
        out_specs=pl.BlockSpec((1, t_order, s_order), lambda b: (b, 0, 0)),
    )

    return pl.pallas_call(
        _st_embedding_kernel,
        out_shape=jax.ShapeDtypeStruct((B, t_order, s_order), jnp.float32),
        grid_spec=grid_spec,
        compiler_params=pltpu.CompilerParams(dimension_semantics=("parallel",)),
    )(dow, tod, w1t, b1, w2, b2, SE_param, ws1, bs1, ws2t, bs2)


# ----------------------------------------------------------------------------
# Deterministic parameter init (shapes from STEmbedding.__init__).
# Note: the PyTorch SE parameter is uninitialized (torch.FloatTensor); here it
# gets a deterministic random init so the test is reproducible.
# ----------------------------------------------------------------------------
def init_params(key, s_order, t_order, num_nodes, input_window, T=288):
    ks = jax.random.split(key, 9)
    return {
        "SE":   0.1 * jax.random.normal(ks[0], (num_nodes, 10), jnp.float32),
        "w_t1": 0.1 * jax.random.normal(ks[1], (s_order, 7 + T), jnp.float32),
        "b_t1": 0.1 * jax.random.normal(ks[2], (s_order,), jnp.float32),
        "w_t2": 0.1 * jax.random.normal(ks[3], (t_order, input_window), jnp.float32),
        "b_t2": 0.1 * jax.random.normal(ks[4], (t_order,), jnp.float32),
        "w_s1": 0.1 * jax.random.normal(ks[5], (t_order, num_nodes), jnp.float32),
        "b_s1": 0.1 * jax.random.normal(ks[6], (t_order,), jnp.float32),
        "w_s2": 0.1 * jax.random.normal(ks[7], (s_order, 10), jnp.float32),
        "b_s2": 0.1 * jax.random.normal(ks[8], (s_order,), jnp.float32),
    }


# ----------------------------------------------------------------------------
# Pure-JAX reference (mirrors the PyTorch forward exactly)
# ----------------------------------------------------------------------------
def reference_forward(TE, SE_param, params, T=288):
    dow = jax.nn.one_hot(TE[..., 0] % 7, 7, dtype=jnp.float32)       # [B, L, 7]
    tod = jax.nn.one_hot(TE[..., 1] % 288, T, dtype=jnp.float32)     # [B, L, T]
    te = jnp.concatenate([dow, tod], axis=-1)                        # [B, L, 7+T]
    h1 = jax.nn.relu(jnp.einsum('oc,blc->bol', params["w_t1"], te)
                     + params["b_t1"][None, :, None])                # [B, s_order, L]
    h2 = jax.nn.relu(jnp.einsum('tl,bol->bto', params["w_t2"], h1)
                     + params["b_t2"][None, :, None])                # [B, t_order, s_order]
    s1 = jax.nn.relu(params["w_s1"] @ SE_param + params["b_s1"][:, None])   # [t, 10]
    s2 = jax.nn.relu((params["w_s2"] @ s1.T + params["b_s2"][:, None]).T)   # [t, s]
    return jax.nn.relu(s2[None] + h2)


if __name__ == "__main__":
    B, L = 2, 16                    # batch, num_his == input_window
    s_order, t_order = 10, 5
    num_nodes = 16
    T = 288

    key = jax.random.PRNGKey(0)
    k_dow, k_tod, k_p = jax.random.split(key, 3)
    dow_idx = jax.random.randint(k_dow, (B, L, 1), 0, 7, jnp.int32)
    tod_idx = jax.random.randint(k_tod, (B, L, 1), 0, 288, jnp.int32)
    TE = jnp.concatenate([dow_idx, tod_idx], axis=-1)                # [B, L, 2]

    params = init_params(k_p, s_order, t_order, num_nodes, L, T)

    ste = st_embedding_forward(TE, params["SE"], params, T)
    jax.block_until_ready(ste)

    ste_ref = reference_forward(TE, params["SE"], params, T)
    assert ste.shape == (B, t_order, s_order)
    assert jnp.allclose(ste, ste_ref, rtol=2e-3, atol=2e-3)
    print("KERNEL_OK")
</pallas_src>

<mosaic_0001>
module attributes {stable_mosaic.version = 11 : i64} {
  func.func @_st_embedding_kernel(%arg0: i32, %arg1: memref<1x16x1xi32, #tpu.memory_space<vmem>>, %arg2: memref<1x16x1xi32, #tpu.memory_space<vmem>>, %arg3: memref<295x10xf32, #tpu.memory_space<vmem>>, %arg4: memref<1x10xf32, #tpu.memory_space<vmem>>, %arg5: memref<5x16xf32, #tpu.memory_space<vmem>>, %arg6: memref<5x1xf32, #tpu.memory_space<vmem>>, %arg7: memref<16x10xf32, #tpu.memory_space<vmem>>, %arg8: memref<5x16xf32, #tpu.memory_space<vmem>>, %arg9: memref<5x1xf32, #tpu.memory_space<vmem>>, %arg10: memref<10x10xf32, #tpu.memory_space<vmem>>, %arg11: memref<1x10xf32, #tpu.memory_space<vmem>>, %arg12: memref<1x5x10xf32, #tpu.memory_space<vmem>>) attributes {dimension_semantics = [#tpu.dimension_semantics<parallel>], iteration_bounds = array<i64: 2>, scalar_prefetch = 0 : i64, scratch_operands = 0 : i64, tpu.core_type = #tpu.core_type<tc>, window_params = [{transform_indices = @transform_0, window_bounds = array<i64: 1, 16, 1>}, {transform_indices = @transform_1, window_bounds = array<i64: 1, 16, 1>}, {pipeline_mode = #tpu.pipeline_mode<synchronous>, transform_indices = @transform_2, window_bounds = array<i64: 295, 10>}, {pipeline_mode = #tpu.pipeline_mode<synchronous>, transform_indices = @transform_3, window_bounds = array<i64: 1, 10>}, {pipeline_mode = #tpu.pipeline_mode<synchronous>, transform_indices = @transform_4, window_bounds = array<i64: 5, 16>}, {pipeline_mode = #tpu.pipeline_mode<synchronous>, transform_indices = @transform_5, window_bounds = array<i64: 5, 1>}, {pipeline_mode = #tpu.pipeline_mode<synchronous>, transform_indices = @transform_6, window_bounds = array<i64: 16, 10>}, {pipeline_mode = #tpu.pipeline_mode<synchronous>, transform_indices = @transform_7, window_bounds = array<i64: 5, 16>}, {pipeline_mode = #tpu.pipeline_mode<synchronous>, transform_indices = @transform_8, window_bounds = array<i64: 5, 1>}, {pipeline_mode = #tpu.pipeline_mode<synchronous>, transform_indices = @transform_9, window_bounds = array<i64: 10, 10>}, {pipeline_mode = #tpu.pipeline_mode<synchronous>, transform_indices = @transform_10, window_bounds = array<i64: 1, 10>}, {transform_indices = @transform_11, window_bounds = array<i64: 1, 5, 10>}]} {
    %0 = tpu.iota {dimensions = array<i32: 1>} : vector<16x295xi32>
    %c0 = arith.constant 0 : index
    %c0_0 = arith.constant 0 : index
    %c0_1 = arith.constant 0 : index
    %1 = vector.load %arg1[%c0, %c0_0, %c0_1] : memref<1x16x1xi32, #tpu.memory_space<vmem>>, vector<1x16x1xi32>
    %2 = vector.shape_cast %1 : vector<1x16x1xi32> to vector<16x1xi32>
    %c0_2 = arith.constant 0 : index
    %c0_3 = arith.constant 0 : index
    %c0_4 = arith.constant 0 : index
    %3 = vector.load %arg2[%c0_2, %c0_3, %c0_4] : memref<1x16x1xi32, #tpu.memory_space<vmem>>, vector<1x16x1xi32>
    %4 = vector.shape_cast %3 : vector<1x16x1xi32> to vector<16x1xi32>
    %5 = vector.broadcast %2 : vector<16x1xi32> to vector<16x295xi32>
    %6 = arith.cmpi eq, %0, %5 : vector<16x295xi32>
    %c7_i32 = arith.constant 7 : i32
    %7 = vector.broadcast %c7_i32 : i32 to vector<16x1xi32>
    %8 = arith.addi %4, %7 : vector<16x1xi32>
    %9 = vector.broadcast %8 : vector<16x1xi32> to vector<16x295xi32>
    %10 = arith.cmpi eq, %0, %9 : vector<16x295xi32>
    %11 = arith.ori %6, %10 : vector<16x295xi1>
    %12 = arith.extui %11 : vector<16x295xi1> to vector<16x295xi32>
    %13 = arith.sitofp %12 : vector<16x295xi32> to vector<16x295xf32>
    %c0_5 = arith.constant 0 : index
    %c0_6 = arith.constant 0 : index
    %14 = vector.load %arg3[%c0_5, %c0_6] : memref<295x10xf32, #tpu.memory_space<vmem>>, vector<295x10xf32>
    %cst = arith.constant dense<0.000000e+00> : vector<16x10xf32>
    %15 = tpu.matmul %13, %14, %cst {dimension_numbers = #tpu.dot_dimension_numbers<[1], [0], [0], [1], [0, 0, 1, 1], [], []>} : vector<16x295xf32>, vector<295x10xf32>, vector<16x10xf32> -> vector<16x10xf32>
    %c0_7 = arith.constant 0 : index
    %c0_8 = arith.constant 0 : index
    %16 = vector.load %arg4[%c0_7, %c0_8] : memref<1x10xf32, #tpu.memory_space<vmem>>, vector<1x10xf32>
    %17 = vector.broadcast %16 : vector<1x10xf32> to vector<16x10xf32>
    %18 = arith.addf %15, %17 : vector<16x10xf32>
    %cst_9 = arith.constant 0.000000e+00 : f32
    %19 = vector.broadcast %cst_9 : f32 to vector<16x10xf32>
    %20 = arith.maximumf %18, %19 : vector<16x10xf32>
    %c0_10 = arith.constant 0 : index
    %c0_11 = arith.constant 0 : index
    %21 = vector.load %arg5[%c0_10, %c0_11] : memref<5x16xf32, #tpu.memory_space<vmem>>, vector<5x16xf32>
    %cst_12 = arith.constant dense<0.000000e+00> : vector<5x10xf32>
    %22 = tpu.matmul %21, %20, %cst_12 {dimension_numbers = #tpu.dot_dimension_numbers<[1], [0], [0], [1], [0, 0, 1, 1], [], []>} : vector<5x16xf32>, vector<16x10xf32>, vector<5x10xf32> -> vector<5x10xf32>
    %c0_13 = arith.constant 0 : index
    %c0_14 = arith.constant 0 : index
    %23 = vector.load %arg6[%c0_13, %c0_14] : memref<5x1xf32, #tpu.memory_space<vmem>>, vector<5x1xf32>
    %24 = vector.broadcast %23 : vector<5x1xf32> to vector<5x10xf32>
    %25 = arith.addf %22, %24 : vector<5x10xf32>
    %cst_15 = arith.constant 0.000000e+00 : f32
    %26 = vector.broadcast %cst_15 : f32 to vector<5x10xf32>
    %27 = arith.maximumf %25, %26 : vector<5x10xf32>
    %c0_16 = arith.constant 0 : index
    %c0_17 = arith.constant 0 : index
    %28 = vector.load %arg8[%c0_16, %c0_17] : memref<5x16xf32, #tpu.memory_space<vmem>>, vector<5x16xf32>
    %c0_18 = arith.constant 0 : index
    %c0_19 = arith.constant 0 : index
    %29 = vector.load %arg7[%c0_18, %c0_19] : memref<16x10xf32, #tpu.memory_space<vmem>>, vector<16x10xf32>
    %cst_20 = arith.constant dense<0.000000e+00> : vector<5x10xf32>
    %30 = tpu.matmul %28, %29, %cst_20 {dimension_numbers = #tpu.dot_dimension_numbers<[1], [0], [0], [1], [0, 0, 1, 1], [], []>} : vector<5x16xf32>, vector<16x10xf32>, vector<5x10xf32> -> vector<5x10xf32>
    %c0_21 = arith.constant 0 : index
    %c0_22 = arith.constant 0 : index
    %31 = vector.load %arg9[%c0_21, %c0_22] : memref<5x1xf32, #tpu.memory_space<vmem>>, vector<5x1xf32>
    %32 = vector.broadcast %31 : vector<5x1xf32> to vector<5x10xf32>
    %33 = arith.addf %30, %32 : vector<5x10xf32>
    %cst_23 = arith.constant 0.000000e+00 : f32
    %34 = vector.broadcast %cst_23 : f32 to vector<5x10xf32>
    %35 = arith.maximumf %33, %34 : vector<5x10xf32>
    %c0_24 = arith.constant 0 : index
    %c0_25 = arith.constant 0 : index
    %36 = vector.load %arg10[%c0_24, %c0_25] : memref<10x10xf32, #tpu.memory_space<vmem>>, vector<10x10xf32>
    %cst_26 = arith.constant dense<0.000000e+00> : vector<5x10xf32>
    %37 = tpu.matmul %35, %36, %cst_26 {dimension_numbers = #tpu.dot_dimension_numbers<[1], [0], [0], [1], [0, 0, 1, 1], [], []>} : vector<5x10xf32>, vector<10x10xf32>, vector<5x10xf32> -> vector<5x10xf32>
    %c0_27 = arith.constant 0 : index
    %c0_28 = arith.constant 0 : index
    %38 = vector.load %arg11[%c0_27, %c0_28] : memref<1x10xf32, #tpu.memory_space<vmem>>, vector<1x10xf32>
    %39 = vector.broadcast %38 : vector<1x10xf32> to vector<5x10xf32>
    %40 = arith.addf %37, %39 : vector<5x10xf32>
    %cst_29 = arith.constant 0.000000e+00 : f32
    %41 = vector.broadcast %cst_29 : f32 to vector<5x10xf32>
    %42 = arith.maximumf %40, %41 : vector<5x10xf32>
    %43 = arith.addf %42, %27 : vector<5x10xf32>
    %cst_30 = arith.constant 0.000000e+00 : f32
    %44 = vector.broadcast %cst_30 : f32 to vector<5x10xf32>
    %45 = arith.maximumf %43, %44 : vector<5x10xf32>
    %c0_31 = arith.constant 0 : index
    %c0_32 = arith.constant 0 : index
    %c0_33 = arith.constant 0 : index
    %46 = vector.load %arg12[%c0_31, %c0_32, %c0_33] : memref<1x5x10xf32, #tpu.memory_space<vmem>>, vector<1x5x10xf32>
    %47 = vector.shape_cast %46 : vector<1x5x10xf32> to vector<5x10xf32>
    %48 = vector.shape_cast %45 : vector<5x10xf32> to vector<1x5x10xf32>
    tpu.vector_store %arg12[%c0_31, %c0_32, %c0_33], %48 {strides = array<i32>} : memref<1x5x10xf32, #tpu.memory_space<vmem>>, vector<1x5x10xf32>,
    return
  }
  func.func @transform_0(%arg0: i32) -> (i32, i32, i32) {
    %c0_i32 = arith.constant 0 : i32
    %c0_i32_0 = arith.constant 0 : i32
    %c0_i32_1 = arith.constant 0 : i32
    return %arg0, %c0_i32, %c0_i32_0 : i32, i32, i32
  }
  func.func @transform_1(%arg0: i32) -> (i32, i32, i32) {
    %c0_i32 = arith.constant 0 : i32
    %c0_i32_0 = arith.constant 0 : i32
    %c0_i32_1 = arith.constant 0 : i32
    return %arg0, %c0_i32, %c0_i32_0 : i32, i32, i32
  }
  func.func @transform_2(%arg0: i32) -> (i32, i32) {
    %c0_i32 = arith.constant 0 : i32
    %c0_i32_0 = arith.constant 0 : i32
    %c0_i32_1 = arith.constant 0 : i32
    return %c0_i32, %c0_i32_0 : i32, i32
  }
  func.func @transform_3(%arg0: i32) -> (i32, i32) {
    %c0_i32 = arith.constant 0 : i32
    %c0_i32_0 = arith.constant 0 : i32
    %c0_i32_1 = arith.constant 0 : i32
    return %c0_i32, %c0_i32_0 : i32, i32
  }
  func.func @transform_4(%arg0: i32) -> (i32, i32) {
    %c0_i32 = arith.constant 0 : i32
    %c0_i32_0 = arith.constant 0 : i32
    %c0_i32_1 = arith.constant 0 : i32
    return %c0_i32, %c0_i32_0 : i32, i32
  }
  func.func @transform_5(%arg0: i32) -> (i32, i32) {
    %c0_i32 = arith.constant 0 : i32
    %c0_i32_0 = arith.constant 0 : i32
    %c0_i32_1 = arith.constant 0 : i32
    return %c0_i32, %c0_i32_0 : i32, i32
  }
  func.func @transform_6(%arg0: i32) -> (i32, i32) {
    %c0_i32 = arith.constant 0 : i32
    %c0_i32_0 = arith.constant 0 : i32
    %c0_i32_1 = arith.constant 0 : i32
    return %c0_i32, %c0_i32_0 : i32, i32
  }
  func.func @transform_7(%arg0: i32) -> (i32, i32) {
    %c0_i32 = arith.constant 0 : i32
    %c0_i32_0 = arith.constant 0 : i32
    %c0_i32_1 = arith.constant 0 : i32
    return %c0_i32, %c0_i32_0 : i32, i32
  }
  func.func @transform_8(%arg0: i32) -> (i32, i32) {
    %c0_i32 = arith.constant 0 : i32
    %c0_i32_0 = arith.constant 0 : i32
    %c0_i32_1 = arith.constant 0 : i32
    return %c0_i32, %c0_i32_0 : i32, i32
  }
  func.func @transform_9(%arg0: i32) -> (i32, i32) {
    %c0_i32 = arith.constant 0 : i32
    %c0_i32_0 = arith.constant 0 : i32
    %c0_i32_1 = arith.constant 0 : i32
    return %c0_i32, %c0_i32_0 : i32, i32
  }
  func.func @transform_10(%arg0: i32) -> (i32, i32) {
    %c0_i32 = arith.constant 0 : i32
    %c0_i32_0 = arith.constant 0 : i32
    %c0_i32_1 = arith.constant 0 : i32
    return %c0_i32, %c0_i32_0 : i32, i32
  }
  func.func @transform_11(%arg0: i32) -> (i32, i32, i32) {
    %c0_i32 = arith.constant 0 : i32
    %c0_i32_0 = arith.constant 0 : i32
    %c0_i32_1 = arith.constant 0 : i32
    return %arg0, %c0_i32, %c0_i32_0 : i32, i32, i32
  }
}

</mosaic_0001>

<llo_original>
// kernel: tpu_custom_call.1
$region0: #{tpu_custom_call.1}
  #allocation0 [shape = 'u32[]', space=smem, size = 0x4, offset = 0x4, fixed_abs, tag = 'smem constant byte address 0x4 - core index']
  #allocation1 [shape = 'u32[144,128]{1,0:T(1,128)}', space=vmem, size = 0x12000, scoped, tag = 'internal scratch']
  %s0 = inlined_call_operand.vmem [shape: s32[2,16,1], index: 0, kind: input, shape index: {}]
  %s1 = inlined_call_operand.vmem [shape: s32[2,16,1], index: 1, kind: input, shape index: {}]
  %s2 = inlined_call_operand.vmem [shape: f32[295,10], index: 2, kind: input, shape index: {}]
  %s3 = inlined_call_operand.vmem [shape: f32[1,10], index: 3, kind: input, shape index: {}]
  %s4 = inlined_call_operand.vmem [shape: f32[5,16], index: 4, kind: input, shape index: {}]
  %s5 = inlined_call_operand.vmem [shape: f32[5,1], index: 5, kind: input, shape index: {}]
  %s6 = inlined_call_operand.vmem [shape: f32[16,10], index: 6, kind: input, shape index: {}]
  %s7 = inlined_call_operand.vmem [shape: f32[5,16], index: 7, kind: input, shape index: {}]
  %s8 = inlined_call_operand.vmem [shape: f32[5,1], index: 8, kind: input, shape index: {}]
  %s9 = inlined_call_operand.vmem [shape: f32[10,10], index: 9, kind: input, shape index: {}]
  %s10 = inlined_call_operand.vmem [shape: f32[1,10], index: 10, kind: input, shape index: {}]
  %s11 = inlined_call_operand.vmem [shape: f32[2,5,10], index: 11, kind: output, shape index: {}]
  %s12 = sld [smem:[#allocation0]]
  $region77: #{tpu_custom_call.1} parent=0
    _
  %s14 = ssub.s32 1, %s12
  %s15 = scalar_select 0, %s14, %s12
  loop: start=0, step=1, limit=4
  $region2: #{tpu_custom_call.1} parent=0 // loop_pre_header
    _
  $region3: #{tpu_custom_call.1} parent=0 // loop_header
    %s17 = sphi 0, %s21
    %p18 = scmp.ge.s32.totalorder %s17, 4
    %s27 = sphi 0, %s29
    %s30 = sphi 0, %s27
    %s31 = sphi 0, %s30
    %s47 = sphi 0, %s31
    %s53 = sphi 0, %s55
    %s56 = sphi 0, %s53
    %s57 = sphi 0, %s56
    %s73 = sphi 0, %s57
    %s77 = sphi 0, %s77
    %s79 = sphi 0, %s77
    %s80 = sphi 0, %s79
    %s94 = sphi 0, %s80
    %s98 = sphi 0, %s98
    %s100 = sphi 0, %s98
    %s101 = sphi 0, %s100
    %s115 = sphi 0, %s101
    %s119 = sphi 0, %s119
    %s121 = sphi 0, %s119
    %s122 = sphi 0, %s121
    %s136 = sphi 0, %s122
    %s140 = sphi 0, %s140
    %s142 = sphi 0, %s140
    %s143 = sphi 0, %s142
    %s157 = sphi 0, %s143
    %s161 = sphi 0, %s161
    %s163 = sphi 0, %s161
    %s164 = sphi 0, %s163
    %s178 = sphi 0, %s164
    %s182 = sphi 0, %s182
    %s184 = sphi 0, %s182
    %s185 = sphi 0, %s184
    %s199 = sphi 0, %s185
    %s203 = sphi 0, %s203
    %s205 = sphi 0, %s203
    %s206 = sphi 0, %s205
    %s220 = sphi 0, %s206
    %s224 = sphi 0, %s224
    %s226 = sphi 0, %s224
    %s227 = sphi 0, %s226
    %s241 = sphi 0, %s227
    %s245 = sphi 0, %s245
    %s247 = sphi 0, %s245
    %s248 = sphi 0, %s247
    %s262 = sphi 0, %s248
    %s268 = sphi 0, %s270
    %s271 = sphi 0, %s268
    %s272 = sphi 0, %s271
    %s288 = sphi 0, %s272
  $region4: #{tpu_custom_call.1} parent=0 // loop_header_branch
    %20 = sbr.rel (%p18) target = $region8
  $region5: #{tpu_custom_call.1} parent=0 // loop_body
    %s22 = ssub.s32 %s17, 1
    %s23 = ssub.s32 %s17, 2
    %s24 = sadd.s32 %s17, 1
    %s25 = ssub.s32 %s17, %s24
    %p26 = scmp.eq.s32.totalorder %s25, 0
    %s28 = sadd.s32 %s27, 1
    %s29 = scalar_select %p26, %s27, %s28
    %p32 = pneg %p26
    %p33 = scmp.eq.s32.totalorder %s17, 1
    %p34 = por %p32, %p33
    %p35 = scmp.ne.s32.totalorder %s27, %s30
    %p36 = scmp.eq.s32.totalorder %s17, 0
    %p37 = por %p35, %p36
    %p38 = scmp.ne.s32.totalorder %s27, %s30
    %p39 = scmp.eq.s32.totalorder %s22, 1
    %p40 = por %p38, %p39
    %p41 = scmp.ne.s32.totalorder %s30, %s31
    %p42 = scmp.eq.s32.totalorder %s22, 0
    %p43 = por %p41, %p42
    %p44 = scmp.ne.s32.totalorder %s30, %s31
    %p45 = scmp.eq.s32.totalorder %s23, 1
    %p46 = por %p44, %p45
    %p48 = scmp.ne.s32.totalorder %s31, %s47
    %p49 = scmp.eq.s32.totalorder %s23, 0
    %p50 = por %p48, %p49
    %s51 = ssub.s32 %s17, %s24
    %p52 = scmp.eq.s32.totalorder %s51, 0
    %s54 = sadd.s32 %s53, 1
    %s55 = scalar_select %p52, %s53, %s54
    %p58 = pneg %p52
    %p59 = scmp.eq.s32.totalorder %s17, 1
    %p60 = por %p58, %p59
    %p61 = scmp.ne.s32.totalorder %s53, %s56
    %p62 = scmp.eq.s32.totalorder %s17, 0
    %p63 = por %p61, %p62
    %p64 = scmp.ne.s32.totalorder %s53, %s56
    %p65 = scmp.eq.s32.totalorder %s22, 1
    %p66 = por %p64, %p65
    %p67 = scmp.ne.s32.totalorder %s56, %s57
    %p68 = scmp.eq.s32.totalorder %s22, 0
    %p69 = por %p67, %p68
    %p70 = scmp.ne.s32.totalorder %s56, %s57
    %p71 = scmp.eq.s32.totalorder %s23, 1
    %p72 = por %p70, %p71
    %p74 = scmp.ne.s32.totalorder %s57, %s73
    %p75 = scmp.eq.s32.totalorder %s23, 0
    %p76 = por %p74, %p75
    %s78 = sadd.s32 %s77, 1
    %p81 = scmp.eq.s32.totalorder %s17, 1
    %p82 = scmp.ne.s32.totalorder %s77, %s79
    %p83 = scmp.eq.s32.totalorder %s17, 0
    %p84 = por %p82, %p83
    %p85 = scmp.ne.s32.totalorder %s77, %s79
    %p86 = scmp.eq.s32.totalorder %s22, 1
    %p87 = por %p85, %p86
    %p88 = scmp.ne.s32.totalorder %s79, %s80
    %p89 = scmp.eq.s32.totalorder %s22, 0
    %p90 = por %p88, %p89
    %p91 = scmp.ne.s32.totalorder %s79, %s80
    %p92 = scmp.eq.s32.totalorder %s23, 1
    %p93 = por %p91, %p92
    %p95 = scmp.ne.s32.totalorder %s80, %s94
    %p96 = scmp.eq.s32.totalorder %s23, 0
    %p97 = por %p95, %p96
    %s99 = sadd.s32 %s98, 1
    %p102 = scmp.eq.s32.totalorder %s17, 1
    %p103 = scmp.ne.s32.totalorder %s98, %s100
    %p104 = scmp.eq.s32.totalorder %s17, 0
    %p105 = por %p103, %p104
    %p106 = scmp.ne.s32.totalorder %s98, %s100
    %p107 = scmp.eq.s32.totalorder %s22, 1
    %p108 = por %p106, %p107
    %p109 = scmp.ne.s32.totalorder %s100, %s101
    %p110 = scmp.eq.s32.totalorder %s22, 0
    %p111 = por %p109, %p110
    %p112 = scmp.ne.s32.totalorder %s100, %s101
    %p113 = scmp.eq.s32.totalorder %s23, 1
    %p114 = por %p112, %p113
    %p116 = scmp.ne.s32.totalorder %s101, %s115
    %p117 = scmp.eq.s32.totalorder %s23, 0
    %p118 = por %p116, %p117
    %s120 = sadd.s32 %s119, 1
    %p123 = scmp.eq.s32.totalorder %s17, 1
    %p124 = scmp.ne.s32.totalorder %s119, %s121
    %p125 = scmp.eq.s32.totalorder %s17, 0
    %p126 = por %p124, %p125
    %p127 = scmp.ne.s32.totalorder %s119, %s121
    %p128 = scmp.eq.s32.totalorder %s22, 1
    %p129 = por %p127, %p128
    %p130 = scmp.ne.s32.totalorder %s121, %s122
    %p131 = scmp.eq.s32.totalorder %s22, 0
    %p132 = por %p130, %p131
    %p133 = scmp.ne.s32.totalorder %s121, %s122
    %p134 = scmp.eq.s32.totalorder %s23, 1
    %p135 = por %p133, %p134
    %p137 = scmp.ne.s32.totalorder %s122, %s136
    %p138 = scmp.eq.s32.totalorder %s23, 0
    %p139 = por %p137, %p138
    %s141 = sadd.s32 %s140, 1
    %p144 = scmp.eq.s32.totalorder %s17, 1
    %p145 = scmp.ne.s32.totalorder %s140, %s142
    %p146 = scmp.eq.s32.totalorder %s17, 0
    %p147 = por %p145, %p146
    %p148 = scmp.ne.s32.totalorder %s140, %s142
    %p149 = scmp.eq.s32.totalorder %s22, 1
    %p150 = por %p148, %p149
    %p151 = scmp.ne.s32.totalorder %s142, %s143
    %p152 = scmp.eq.s32.totalorder %s22, 0
    %p153 = por %p151, %p152
    %p154 = scmp.ne.s32.totalorder %s142, %s143
    %p155 = scmp.eq.s32.totalorder %s23, 1
    %p156 = por %p154, %p155
    %p158 = scmp.ne.s32.totalorder %s143, %s157
    %p159 = scmp.eq.s32.totalorder %s23, 0
    %p160 = por %p158, %p159
    %s162 = sadd.s32 %s161, 1
    %p165 = scmp.eq.s32.totalorder %s17, 1
    %p166 = scmp.ne.s32.totalorder %s161, %s163
    %p167 = scmp.eq.s32.totalorder %s17, 0
    %p168 = por %p166, %p167
    %p169 = scmp.ne.s32.totalorder %s161, %s163
    %p170 = scmp.eq.s32.totalorder %s22, 1
    %p171 = por %p169, %p170
    %p172 = scmp.ne.s32.totalorder %s163, %s164
    %p173 = scmp.eq.s32.totalorder %s22, 0
    %p174 = por %p172, %p173
    %p175 = scmp.ne.s32.totalorder %s163, %s164
    %p176 = scmp.eq.s32.totalorder %s23, 1
    %p177 = por %p175, %p176
    %p179 = scmp.ne.s32.totalorder %s164, %s178
    %p180 = scmp.eq.s32.totalorder %s23, 0
    %p181 = por %p179, %p180
    %s183 = sadd.s32 %s182, 1
    %p186 = scmp.eq.s32.totalorder %s17, 1
    %p187 = scmp.ne.s32.totalorder %s182, %s184
    %p188 = scmp.eq.s32.totalorder %s17, 0
    %p189 = por %p187, %p188
    %p190 = scmp.ne.s32.totalorder %s182, %s184
    %p191 = scmp.eq.s32.totalorder %s22, 1
    %p192 = por %p190, %p191
    %p193 = scmp.ne.s32.totalorder %s184, %s185
    %p194 = scmp.eq.s32.totalorder %s22, 0
    %p195 = por %p193, %p194
    %p196 = scmp.ne.s32.totalorder %s184, %s185
    %p197 = scmp.eq.s32.totalorder %s23, 1
    %p198 = por %p196, %p197
    %p200 = scmp.ne.s32.totalorder %s185, %s199
    %p201 = scmp.eq.s32.totalorder %s23, 0
    %p202 = por %p200, %p201
    %s204 = sadd.s32 %s203, 1
    %p207 = scmp.eq.s32.totalorder %s17, 1
    %p208 = scmp.ne.s32.totalorder %s203, %s205
    %p209 = scmp.eq.s32.totalorder %s17, 0
    %p210 = por %p208, %p209
    %p211 = scmp.ne.s32.totalorder %s203, %s205
    %p212 = scmp.eq.s32.totalorder %s22, 1
    %p213 = por %p211, %p212
    %p214 = scmp.ne.s32.totalorder %s205, %s206
    %p215 = scmp.eq.s32.totalorder %s22, 0
    %p216 = por %p214, %p215
    %p217 = scmp.ne.s32.totalorder %s205, %s206
    %p218 = scmp.eq.s32.totalorder %s23, 1
    %p219 = por %p217, %p218
    %p221 = scmp.ne.s32.totalorder %s206, %s220
    %p222 = scmp.eq.s32.totalorder %s23, 0
    %p223 = por %p221, %p222
    %s225 = sadd.s32 %s224, 1
    %p228 = scmp.eq.s32.totalorder %s17, 1
    %p229 = scmp.ne.s32.totalorder %s224, %s226
    %p230 = scmp.eq.s32.totalorder %s17, 0
    %p231 = por %p229, %p230
    %p232 = scmp.ne.s32.totalorder %s224, %s226
    %p233 = scmp.eq.s32.totalorder %s22, 1
    %p234 = por %p232, %p233
    %p235 = scmp.ne.s32.totalorder %s226, %s227
    %p236 = scmp.eq.s32.totalorder %s22, 0
    %p237 = por %p235, %p236
    %p238 = scmp.ne.s32.totalorder %s226, %s227
    %p239 = scmp.eq.s32.totalorder %s23, 1
    %p240 = por %p238, %p239
    %p242 = scmp.ne.s32.totalorder %s227, %s241
    %p243 = scmp.eq.s32.totalorder %s23, 0
    %p244 = por %p242, %p243
    %s246 = sadd.s32 %s245, 1
    %p249 = scmp.eq.s32.totalorder %s17, 1
    %p250 = scmp.ne.s32.totalorder %s245, %s247
    %p251 = scmp.eq.s32.totalorder %s17, 0
    %p252 = por %p250, %p251
    %p253 = scmp.ne.s32.totalorder %s245, %s247
    %p254 = scmp.eq.s32.totalorder %s22, 1
    %p255 = por %p253, %p254
    %p256 = scmp.ne.s32.totalorder %s247, %s248
    %p257 = scmp.eq.s32.totalorder %s22, 0
    %p258 = por %p256, %p257
    %p259 = scmp.ne.s32.totalorder %s247, %s248
    %p260 = scmp.eq.s32.totalorder %s23, 1
    %p261 = por %p259, %p260
    %p263 = scmp.ne.s32.totalorder %s248, %s262
    %p264 = scmp.eq.s32.totalorder %s23, 0
    %p265 = por %p263, %p264
    %s266 = ssub.s32 %s17, %s24
    %p267 = scmp.eq.s32.totalorder %s266, 0
    %s269 = sadd.s32 %s268, 1
    %s270 = scalar_select %p267, %s268, %s269
    %p273 = pneg %p267
    %p274 = scmp.eq.s32.totalorder %s17, 1
    %p275 = por %p273, %p274
    %p276 = scmp.ne.s32.totalorder %s268, %s271
    %p277 = scmp.eq.s32.totalorder %s17, 0
    %p278 = por %p276, %p277
    %p279 = scmp.ne.s32.totalorder %s268, %s271
    %p280 = scmp.eq.s32.totalorder %s22, 1
    %p281 = por %p279, %p280
    %p282 = scmp.ne.s32.totalorder %s271, %s272
    %p283 = scmp.eq.s32.totalorder %s22, 0
    %p284 = por %p282, %p283
    %p285 = scmp.ne.s32.totalorder %s271, %s272
    %p286 = scmp.eq.s32.totalorder %s23, 1
    %p287 = por %p285, %p286
    %p289 = scmp.ne.s32.totalorder %s272, %s288
    %p290 = scmp.eq.s32.totalorder %s23, 0
    %p291 = por %p289, %p290
    %p292 = scmp.le.s32.totalorder 1, %s17
    %p293 = scmp.lt.s32.totalorder %s17, 3
    %p294 = pnand %p292, %p293
    %p295 = pneg %p294
    // Predicated region
    $region9: #{tpu_custom_call.1} parent=5 // pred_check
      _
    $region10: #{tpu_custom_call.1} parent=5 // pred_check_branch
      %297 = sbr.rel (%p294) target = $region12
    $region11: #{tpu_custom_call.1} parent=5 // pred_region
      %s298 = ssub.s32 %s17, 1
      // Predicated region
      $region13: #{tpu_custom_call.1} parent=11 // pred_check
        %p299 = pneg %p90
      $region14: #{tpu_custom_call.1} parent=11 // pred_check_branch
        %301 = sbr.rel (%p299) target = $region16
      $region15: #{tpu_custom_call.1} parent=11 // pred_region
        _
      $region16: #{tpu_custom_call.1} parent=11 // pred_fallthru
        _
      // Predicated region
      $region17: #{tpu_custom_call.1} parent=11 // pred_check
        %p302 = pneg %p111
      $region18: #{tpu_custom_call.1} parent=11 // pred_check_branch
        %304 = sbr.rel (%p302) target = $region20
      $region19: #{tpu_custom_call.1} parent=11 // pred_region
        _
      $region20: #{tpu_custom_call.1} parent=11 // pred_fallthru
        _
      // Predicated region
      $region21: #{tpu_custom_call.1} parent=11 // pred_check
        %p305 = pneg %p132
      $region22: #{tpu_custom_call.1} parent=11 // pred_check_branch
        %307 = sbr.rel (%p305) target = $region24
      $region23: #{tpu_custom_call.1} parent=11 // pred_region
        _
      $region24: #{tpu_custom_call.1} parent=11 // pred_fallthru
        _
      // Predicated region
      $region25: #{tpu_custom_call.1} parent=11 // pred_check
        %p308 = pneg %p153
      $region26: #{tpu_custom_call.1} parent=11 // pred_check_branch
        %310 = sbr.rel (%p308) target = $region28
      $region27: #{tpu_custom_call.1} parent=11 // pred_region
        _
      $region28: #{tpu_custom_call.1} parent=11 // pred_fallthru
        _
      // Predicated region
      $region29: #{tpu_custom_call.1} parent=11 // pred_check
        %p311 = pneg %p174
      $region30: #{tpu_custom_call.1} parent=11 // pred_check_branch
        %313 = sbr.rel (%p311) target = $region32
      $region31: #{tpu_custom_call.1} parent=11 // pred_region
        _
      $region32: #{tpu_custom_call.1} parent=11 // pred_fallthru
        _
      // Predicated region
      $region33: #{tpu_custom_call.1} parent=11 // pred_check
        %p314 = pneg %p195
      $region34: #{tpu_custom_call.1} parent=11 // pred_check_branch
        %316 = sbr.rel (%p314) target = $region36
      $region35: #{tpu_custom_call.1} parent=11 // pred_region
        _
      $region36: #{tpu_custom_call.1} parent=11 // pred_fallthru
        _
      // Predicated region
      $region37: #{tpu_custom_call.1} parent=11 // pred_check
        %p317 = pneg %p216
      $region38: #{tpu_custom_call.1} parent=11 // pred_check_branch
        %319 = sbr.rel (%p317) target = $region40
      $region39: #{tpu_custom_call.1} parent=11 // pred_region
        _
      $region40: #{tpu_custom_call.1} parent=11 // pred_fallthru
        _
      // Predicated region
      $region41: #{tpu_custom_call.1} parent=11 // pred_check
        %p320 = pneg %p237
      $region42: #{tpu_custom_call.1} parent=11 // pred_check_branch
        %322 = sbr.rel (%p320) target = $region44
      $region43: #{tpu_custom_call.1} parent=11 // pred_region
        _
      $region44: #{tpu_custom_call.1} parent=11 // pred_fallthru
        _
      // Predicated region
      $region45: #{tpu_custom_call.1} parent=11 // pred_check
        %p323 = pneg %p258
      $region46: #{tpu_custom_call.1} parent=11 // pred_check_branch
        %325 = sbr.rel (%p323) target = $region48
      $region47: #{tpu_custom_call.1} parent=11 // pred_region
        _
      $region48: #{tpu_custom_call.1} parent=11 // pred_fallthru
        _
    $region12: #{tpu_custom_call.1} parent=5 // pred_fallthru
      _
    %p326 = scmp.lt.s32.totalorder %s17, 2
    // Predicated region
    $region49: #{tpu_custom_call.1} parent=5 // pred_check
      %p327 = pneg %p326
    $region50: #{tpu_custom_call.1} parent=5 // pred_check_branch
      %329 = sbr.rel (%p327) target = $region52
    $region51: #{tpu_custom_call.1} parent=5 // pred_region
      // Predicated region
      $region53: #{tpu_custom_call.1} parent=51 // pred_check
        %p330 = pneg %p37
      $region54: #{tpu_custom_call.1} parent=51 // pred_check_branch
        %332 = sbr.rel (%p330) target = $region56
      $region55: #{tpu_custom_call.1} parent=51 // pred_region
        %p333 = scmp.lt.s32.totalorder %s17, 1
        %s334 = scalar_select %p333, %s17, 1
        %s335 = smul.addr %s334, 2
        %s336 = smul.addr %s335, 8
        %s337 = scalar_lea.vmem %s0, %s336
      $region56: #{tpu_custom_call.1} parent=51 // pred_fallthru
        _
      // Predicated region
      $region57: #{tpu_custom_call.1} parent=51 // pred_check
        %p338 = pneg %p63
      $region58: #{tpu_custom_call.1} parent=51 // pred_check_branch
        %340 = sbr.rel (%p338) target = $region60
      $region59: #{tpu_custom_call.1} parent=51 // pred_region
        %p341 = scmp.lt.s32.totalorder %s17, 1
        %s342 = scalar_select %p341, %s17, 1
        %s343 = smul.addr %s342, 2
        %s344 = smul.addr %s343, 8
        %s345 = scalar_lea.vmem %s1, %s344
      $region60: #{tpu_custom_call.1} parent=51 // pred_fallthru
        _
    $region52: #{tpu_custom_call.1} parent=5 // pred_fallthru
      _
    %p346 = scmp.le.s32.totalorder 1, %s17
    %p347 = scmp.lt.s32.totalorder %s17, 3
    %p348 = pnand %p346, %p347
    %p349 = pneg %p348
    // Predicated region
    $region61: #{tpu_custom_call.1} parent=5 // pred_check
      _
    $region62: #{tpu_custom_call.1} parent=5 // pred_check_branch
      %351 = sbr.rel (%p348) target = $region64
    $region63: #{tpu_custom_call.1} parent=5 // pred_region
      %s352 = ssub.s32 %s17, 1
      %p353 = scmp.lt.s32.totalorder %s22, 1
      %s354 = scalar_select %p353, %s22, 1
      %s355 = smul.addr %s354, 2
      %s356 = smul.addr %s355, 8
      %s357 = scalar_lea.vmem %s0, %s356
      %p358 = pneg %p43
      %p359 = pneg %p40
      %p360 = scmp.lt.s32.totalorder %s22, 1
      %s361 = scalar_select %p360, %s22, 1
      %s362 = smul.addr %s361, 2
      %s363 = smul.addr %s362, 8
      %s364 = scalar_lea.vmem %s1, %s363
      %p365 = pneg %p69
      %p366 = pneg %p66
      %p367 = pneg %p90
      %p368 = pneg %p87
      %p369 = pneg %p111
      %p370 = pneg %p108
      %p371 = pneg %p132
      %p372 = pneg %p129
      %p373 = pneg %p153
      %p374 = pneg %p150
      %p375 = pneg %p174
      %p376 = pneg %p171
      %p377 = pneg %p195
      %p378 = pneg %p192
      %p379 = pneg %p216
      %p380 = pneg %p213
      %p381 = pneg %p237
      %p382 = pneg %p234
      %p383 = pneg %p258
      %p384 = pneg %p255
      %p385 = pneg %p284
      %p386 = pneg %p281
      %p387 = scmp.lt.s32.totalorder %s22, 1
      %s388 = scalar_select %p387, %s22, 1
      %s389 = smul.addr %s388, 8
      %s390 = scalar_lea.vmem %s11, %s389
      %p391 = scmp.lt.s32.totalorder %s22, 1
      %s392 = scalar_select %p391, %s22, 1
      %s393 = smul.addr %s392, 2
      %s394 = smul.addr %s393, 8
      %s395 = scalar_lea.vmem %s0, %s394
      %p396 = scmp.lt.s32.totalorder %s22, 1
      %s397 = scalar_select %p396, %s22, 1
      %s398 = smul.addr %s397, 2
      %s399 = smul.addr %s398, 8
      %s400 = scalar_lea.vmem %s1, %s399
      %p401 = scmp.lt.s32.totalorder %s22, 1
      %s402 = scalar_select %p401, %s22, 1
      %s403 = smul.addr %s402, 8
      %s404 = scalar_lea.vmem %s11, %s403
      %v405 = vlaneseq
      %v406 = vand.u32 %v405, 127
      %v407 = vadd.s32 %v406, 128
      %v408 = vadd.s32 %v406, 256
      %v409 = vld [vmem:[%s395] sm:$0xff]
      %v410 = vld [vmem:[%s395 + $0x8] sm:$0xff]
      %v411 = vld [vmem:[%s400] sm:$0xff]
      %v412 = vld [vmem:[%s400 + $0x8] sm:$0xff]
      %413 = vset.pattern.permute.xlu0 0
      %414 = vperm.xlu0 %413, %v409
      %v415 = vpop.permute.xlu0 %414
      %416 = vset.pattern.permute.xlu0 0
      %417 = vperm.xlu0 %416, %v410
      %v418 = vpop.permute.xlu0 %417
      %vm419 = vcmp.eq.s32.totalorder %v406, %v415
      %vm420 = vcmp.eq.s32.totalorder %v407, %v415
      %vm421 = vcmp.eq.s32.totalorder %v408, %v415
      %vm422 = vcmp.eq.s32.totalorder %v406, %v418
      %vm423 = vcmp.eq.s32.totalorder %v407, %v418
      %vm424 = vcmp.eq.s32.totalorder %v408, %v418
      %v425 = vadd.s32 %v411, 7
      %v426 = vadd.s32 %v412, 7
      %427 = vset.pattern.permute.xlu0 0
      %428 = vperm.xlu0 %427, %v425
      %v429 = vpop.permute.xlu0 %428
      %430 = vset.pattern.permute.xlu0 0
      %431 = vperm.xlu0 %430, %v426
      %v432 = vpop.permute.xlu0 %431
      %vm433 = vcmp.eq.s32.totalorder %v406, %v429
      %vm434 = vcmp.eq.s32.totalorder %v407, %v429
      %vm435 = vcmp.eq.s32.totalorder %v408, %v429
      %vm436 = vcmp.eq.s32.totalorder %v406, %v432
      %vm437 = vcmp.eq.s32.totalorder %v407, %v432
      %vm438 = vcmp.eq.s32.totalorder %v408, %v432
      %vm439 = vmor %vm419, %vm433
      %vm440 = vmor %vm420, %vm434
      %vm441 = vmor %vm421, %vm435
      %vm442 = vmor %vm422, %vm436
      %vm443 = vmor %vm423, %vm437
      %vm444 = vmor %vm424, %vm438
      %v445 = vsel %vm439, 1, 0
      %v446 = vsel %vm440, 1, 0
      %v447 = vsel %vm441, 1, 0
      %v448 = vsel %vm442, 1, 0
      %v449 = vsel %vm443, 1, 0
      %v450 = vsel %vm444, 1, 0
      %v451 = vcvt.s32.f32 %v445
      %v452 = vcvt.s32.f32 %v446
      %v453 = vcvt.s32.f32 %v447
      %v454 = vcvt.s32.f32 %v448
      %v455 = vcvt.s32.f32 %v449
      %v456 = vcvt.s32.f32 %v450
      %v457 = vld [vmem:[%s2] sm:$0xff]
      %v458 = vld [vmem:[%s2 + $0x8] sm:$0xff]
      %v459 = vld [vmem:[%s2 + $0x10] sm:$0xff]
      %v460 = vld [vmem:[%s2 + $0x18] sm:$0xff]
      %v461 = vld [vmem:[%s2 + $0x20] sm:$0xff]
      %v462 = vld [vmem:[%s2 + $0x28] sm:$0xff]
      %v463 = vld [vmem:[%s2 + $0x30] sm:$0xff]
      %v464 = vld [vmem:[%s2 + $0x38] sm:$0xff]
      %v465 = vld [vmem:[%s2 + $0x40] sm:$0xff]
      %v466 = vld [vmem:[%s2 + $0x48] sm:$0xff]
      %v467 = vld [vmem:[%s2 + $0x50] sm:$0xff]
      %v468 = vld [vmem:[%s2 + $0x58] sm:$0xff]
      %v469 = vld [vmem:[%s2 + $0x60] sm:$0xff]
      %v470 = vld [vmem:[%s2 + $0x68] sm:$0xff]
      %v471 = vld [vmem:[%s2 + $0x70] sm:$0xff]
      %v472 = vld [vmem:[%s2 + $0x78] sm:$0xff]
      %v473 = vld [vmem:[%s2 + $0x80] sm:$0xff]
      %v474 = vld [vmem:[%s2 + $0x88] sm:$0xff]
      %v475 = vld [vmem:[%s2 + $0x90] sm:$0xff]
      %v476 = vld [vmem:[%s2 + $0x98] sm:$0xff]
      %v477 = vld [vmem:[%s2 + $0xa0] sm:$0xff]
      %v478 = vld [vmem:[%s2 + $0xa8] sm:$0xff]
      %v479 = vld [vmem:[%s2 + $0xb0] sm:$0xff]
      %v480 = vld [vmem:[%s2 + $0xb8] sm:$0xff]
      %v481 = vld [vmem:[%s2 + $0xc0] sm:$0xff]
      %v482 = vld [vmem:[%s2 + $0xc8] sm:$0xff]
      %v483 = vld [vmem:[%s2 + $0xd0] sm:$0xff]
      %v484 = vld [vmem:[%s2 + $0xd8] sm:$0xff]
      %v485 = vld [vmem:[%s2 + $0xe0] sm:$0xff]
      %v486 = vld [vmem:[%s2 + $0xe8] sm:$0xff]
      %v487 = vld [vmem:[%s2 + $0xf0] sm:$0xff]
      %v488 = vld [vmem:[%s2 + $0xf8] sm:$0xff]
      %v489 = vld [vmem:[%s2 + $0x100] sm:$0xff]
      %v490 = vld [vmem:[%s2 + $0x108] sm:$0xff]
      %v491 = vld [vmem:[%s2 + $0x110] sm:$0xff]
      %v492 = vld [vmem:[%s2 + $0x118] sm:$0xff]
      %v493 = vld [vmem:[%s2 + $0x120] sm:$0x7f]
      %v494 = vld [vmem:[%s3] sm:$0x1]
      %v496 = vlaneseq
      %v497 = vshrl.u32 %v496, 7
      %v498 = vsub.s32 0, %v497
      %v499 = vrot.slane %v494, %v498
      %vm501 = vcmask 318464
      %v503 = vsel %vm501, %v453, 0
      %v506 = vsel %vm501, %v456, 0
      %vm508 = vcmask 1046528
      %v510 = vsel %vm508, %v493, 0
      %512 = vmatprep.subr.mxu0 0.0
      %513 = vmatpush1.msra.mxu0 %v472
      %514 = vmatprep.subr.mxu0 0.0
      %515 = vmatpush1.msra.mxu0 %v471
      %516 = vmatprep.subr.mxu0 0.0
      %517 = vmatpush1.msra.mxu0 %v470
      %518 = vmatprep.subr.mxu0 0.0
      %519 = vmatpush1.msra.mxu0 %v469
      %520 = vmatprep.subr.mxu0 0.0
      %521 = vmatpush1.msra.mxu0 %v468
      %522 = vmatprep.subr.mxu0 0.0
      %523 = vmatpush1.msra.mxu0 %v467
      %524 = vmatprep.subr.mxu0 0.0
      %525 = vmatpush1.msra.mxu0 %v466
      %526 = vmatprep.subr.mxu0 0.0
      %527 = vmatpush1.msra.mxu0 %v465
      %528 = vmatprep.subr.mxu0 0.0
      %529 = vmatpush1.msra.mxu0 %v464
      %530 = vmatprep.subr.mxu0 0.0
      %531 = vmatpush1.msra.mxu0 %v463
      %532 = vmatprep.subr.mxu0 0.0
      %533 = vmatpush1.msra.mxu0 %v462
      %534 = vmatprep.subr.mxu0 0.0
      %535 = vmatpush1.msra.mxu0 %v461
      %536 = vmatprep.subr.mxu0 0.0
      %537 = vmatpush1.msra.mxu0 %v460
      %538 = vmatprep.subr.mxu0 0.0
      %539 = vmatpush1.msra.mxu0 %v459
      %540 = vmatprep.subr.mxu0 0.0
      %541 = vmatpush1.msra.mxu0 %v458
      %542 = vmatprep.subr.mxu0 0.0
      %543 = vmatpush1.msra.mxu0 %v457
      %544 = vmatprep.subr.mxu0 0.0
      %545 = vmatpush2.msra.mxu0 %v488
      %546 = vmatprep.subr.mxu0 0.0
      %547 = vmatpush2.msra.mxu0 %v487
      %548 = vmatprep.subr.mxu0 0.0
      %549 = vmatpush2.msra.mxu0 %v486
      %550 = vmatprep.subr.mxu0 0.0
      %551 = vmatpush2.msra.mxu0 %v485
      %552 = vmatprep.subr.mxu0 0.0
      %553 = vmatpush2.msra.mxu0 %v484
      %554 = vmatprep.subr.mxu0 0.0
      %555 = vmatpush2.msra.mxu0 %v483
      %556 = vmatprep.subr.mxu0 0.0
      %557 = vmatpush2.msra.mxu0 %v482
      %558 = vmatprep.subr.mxu0 0.0
      %559 = vmatpush2.msra.mxu0 %v481
      %560 = vmatprep.subr.mxu0 0.0
      %561 = vmatpush2.msra.mxu0 %v480
      %562 = vmatprep.subr.mxu0 0.0
      %563 = vmatpush2.msra.mxu0 %v479
      %564 = vmatprep.subr.mxu0 0.0
      %565 = vmatpush2.msra.mxu0 %v478
      %566 = vmatprep.subr.mxu0 0.0
      %567 = vmatpush2.msra.mxu0 %v477
      %568 = vmatprep.subr.mxu0 0.0
      %569 = vmatpush2.msra.mxu0 %v476
      %570 = vmatprep.subr.mxu0 0.0
      %571 = vmatpush2.msra.mxu0 %v475
      %572 = vmatprep.subr.mxu0 0.0
      %573 = vmatpush2.msra.mxu0 %v474
      %574 = vmatprep.subr.mxu0 0.0
      %575 = vmatpush2.msra.mxu0 %v473
      %576 = vmatprep.mubr.f32.mxu0 %v452
      %577 = vmatmul.mubr.f32.gmra.mxu0 %v451
      %v578 = vpop.f32.mrf.mxu0
      %v579 = vadd.f32 %v499, %v578
      %v580 = vpop.f32.mrf.mxu0
      %581 = vmatprep.mubr.f32.mxu0 %v455
      %582 = vmatmul.mubr.f32.gmra.mxu0 %v454
      %v583 = vpop.f32.mrf.mxu0
      %v584 = vadd.f32 %v499, %v583
      %v585 = vpop.f32.mrf.mxu0
      %586 = vdwg.mxu0
      %587 = vmatprep.subr.mxu0 0.0
      %588 = vmatpush1.msra.mxu0 0.0
      %589 = vmatprep.subr.mxu0 0.0
      %590 = vmatpush1.msra.mxu0 0.0
      %591 = vmatprep.subr.mxu0 0.0
      %592 = vmatpush1.msra.mxu0 0.0
      %593 = vmatprep.subr.mxu0 0.0
      %594 = vmatpush1.msra.mxu0 0.0
      %595 = vmatprep.subr.mxu0 0.0
      %596 = vmatpush1.msra.mxu0 0.0
      %597 = vmatprep.subr.mxu0 0.0
      %598 = vmatpush1.msra.mxu0 0.0
      %599 = vmatprep.subr.mxu0 0.0
      %600 = vmatpush1.msra.mxu0 0.0
      %601 = vmatprep.subr.mxu0 0.0
      %602 = vmatpush1.msra.mxu0 0.0
      %603 = vmatprep.subr.mxu0 0.0
      %604 = vmatpush1.msra.mxu0 0.0
      %605 = vmatprep.subr.mxu0 0.0
      %606 = vmatpush1.msra.mxu0 0.0
      %607 = vmatprep.subr.mxu0 0.0
      %608 = vmatpush1.msra.mxu0 0.0
      %609 = vmatprep.subr.mxu0 0.0
      %610 = vmatpush1.msra.mxu0 %v510
      %611 = vmatprep.subr.mxu0 0.0
      %612 = vmatpush1.msra.mxu0 %v492
      %613 = vmatprep.subr.mxu0 0.0
      %614 = vmatpush1.msra.mxu0 %v491
      %615 = vmatprep.subr.mxu0 0.0
      %616 = vmatpush1.msra.mxu0 %v490
      %617 = vmatprep.subr.mxu0 0.0
      %618 = vmatpush1.msra.mxu0 %v489
      %619 = vmatprep.subr.mxu0 0.0
      %620 = vmatpush2.msra.mxu0 0.0
      %621 = vmatprep.subr.mxu0 0.0
      %622 = vmatpush2.msra.mxu0 0.0
      %623 = vmatprep.subr.mxu0 0.0
      %624 = vmatpush2.msra.mxu0 0.0
      %625 = vmatprep.subr.mxu0 0.0
      %626 = vmatpush2.msra.mxu0 0.0
      %627 = vmatprep.subr.mxu0 0.0
      %628 = vmatpush2.msra.mxu0 0.0
      %629 = vmatprep.subr.mxu0 0.0
      %630 = vmatpush2.msra.mxu0 0.0
      %631 = vmatprep.subr.mxu0 0.0
      %632 = vmatpush2.msra.mxu0 0.0
      %633 = vmatprep.subr.mxu0 0.0
      %634 = vmatpush2.msra.mxu0 0.0
      %635 = vmatprep.subr.mxu0 0.0
      %636 = vmatpush2.msra.mxu0 0.0
      %637 = vmatprep.subr.mxu0 0.0
      %638 = vmatpush2.msra.mxu0 0.0
      %639 = vmatprep.subr.mxu0 0.0
      %640 = vmatpush2.msra.mxu0 0.0
      %641 = vmatprep.subr.mxu0 0.0
      %642 = vmatpush2.msra.mxu0 0.0
      %643 = vmatprep.subr.mxu0 0.0
      %644 = vmatpush2.msra.mxu0 0.0
      %645 = vmatprep.subr.mxu0 0.0
      %646 = vmatpush2.msra.mxu0 0.0
      %647 = vmatprep.subr.mxu0 0.0
      %648 = vmatpush2.msra.mxu0 0.0
      %649 = vmatprep.subr.mxu0 0.0
      %650 = vmatpush2.msra.mxu0 0.0
      %651 = vmatprep.mubr.f32.mxu0 0.0
      %652 = vmatmul.mubr.f32.gmra.mxu0 %v503
      %v653 = vpop.f32.mrf.mxu0
      %v654 = vadd.f32 %v579, %v653
      %v655 = vpop.f32.mrf.mxu0
      %656 = vmatprep.mubr.f32.mxu0 0.0
      %657 = vmatmul.mubr.f32.gmra.mxu0 %v506
      %v658 = vpop.f32.mrf.mxu0
      %v659 = vadd.f32 %v584, %v658
      %v660 = vpop.f32.mrf.mxu0
      %661 = vdwg.mxu0
      %v662 = vmax.f32 %v654, 0.0
      %v663 = vmax.f32 %v659, 0.0
      %v664 = vld [vmem:[%s4] sm:$0x1f]
      %v665 = vld [vmem:[%s5] sm:$0x1f]
      %667 = vset.pattern.permute.xlu0 0
      %668 = vperm.xlu0 %667, %v665
      %v669 = vpop.permute.xlu0 %668
      %vm671 = vcmask 130048
      %v673 = vsel %vm671, %v664, 0
      %675 = vmatprep.subr.mxu0 0.0
      %676 = vmatpush1.msra.mxu0 0.0
      %677 = vmatprep.subr.mxu0 0.0
      %678 = vmatpush1.msra.mxu0 0.0
      %679 = vmatprep.subr.mxu0 0.0
      %680 = vmatpush1.msra.mxu0 0.0
      %681 = vmatprep.subr.mxu0 0.0
      %682 = vmatpush1.msra.mxu0 0.0
      %683 = vmatprep.subr.mxu0 0.0
      %684 = vmatpush1.msra.mxu0 0.0
      %685 = vmatprep.subr.mxu0 0.0
      %686 = vmatpush1.msra.mxu0 0.0
      %687 = vmatprep.subr.mxu0 0.0
      %688 = vmatpush1.msra.mxu0 0.0
      %689 = vmatprep.subr.mxu0 0.0
      %690 = vmatpush1.msra.mxu0 0.0
      %691 = vmatprep.subr.mxu0 0.0
      %692 = vmatpush1.msra.mxu0 0.0
      %693 = vmatprep.subr.mxu0 0.0
      %694 = vmatpush1.msra.mxu0 0.0
      %695 = vmatprep.subr.mxu0 0.0
      %696 = vmatpush1.msra.mxu0 0.0
      %697 = vmatprep.subr.mxu0 0.0
      %698 = vmatpush1.msra.mxu0 0.0
      %699 = vmatprep.subr.mxu0 0.0
      %700 = vmatpush1.msra.mxu0 0.0
      %701 = vmatprep.subr.mxu0 0.0
      %702 = vmatpush1.msra.mxu0 0.0
      %703 = vmatprep.subr.mxu0 0.0
      %704 = vmatpush1.msra.mxu0 %v663
      %705 = vmatprep.subr.mxu0 0.0
      %706 = vmatpush1.msra.mxu0 %v662
      %707 = vmatprep.subr.mxu0 0.0
      %708 = vmatpush2.msra.mxu0 0.0
      %709 = vmatprep.subr.mxu0 0.0
      %710 = vmatpush2.msra.mxu0 0.0
      %711 = vmatprep.subr.mxu0 0.0
      %712 = vmatpush2.msra.mxu0 0.0
      %713 = vmatprep.subr.mxu0 0.0
      %714 = vmatpush2.msra.mxu0 0.0
      %715 = vmatprep.subr.mxu0 0.0
      %716 = vmatpush2.msra.mxu0 0.0
      %717 = vmatprep.subr.mxu0 0.0
      %718 = vmatpush2.msra.mxu0 0.0
      %719 = vmatprep.subr.mxu0 0.0
      %720 = vmatpush2.msra.mxu0 0.0
      %721 = vmatprep.subr.mxu0 0.0
      %722 = vmatpush2.msra.mxu0 0.0
      %723 = vmatprep.subr.mxu0 0.0
      %724 = vmatpush2.msra.mxu0 0.0
      %725 = vmatprep.subr.mxu0 0.0
      %726 = vmatpush2.msra.mxu0 0.0
      %727 = vmatprep.subr.mxu0 0.0
      %728 = vmatpush2.msra.mxu0 0.0
      %729 = vmatprep.subr.mxu0 0.0
      %730 = vmatpush2.msra.mxu0 0.0
      %731 = vmatprep.subr.mxu0 0.0
      %732 = vmatpush2.msra.mxu0 0.0
      %733 = vmatprep.subr.mxu0 0.0
      %734 = vmatpush2.msra.mxu0 0.0
      %735 = vmatprep.subr.mxu0 0.0
      %736 = vmatpush2.msra.mxu0 0.0
      %737 = vmatprep.subr.mxu0 0.0
      %738 = vmatpush2.msra.mxu0 0.0
      %739 = vmatprep.mubr.f32.mxu0 0.0
      %740 = vmatmul.mubr.f32.gmra.mxu0 %v673
      %v741 = vpop.f32.mrf.mxu0
      %v742 = vadd.f32 %v669, %v741
      %v743 = vpop.f32.mrf.mxu0
      %744 = vdwg.mxu0
      %v745 = vmax.f32 %v742, 0.0
      %v746 = vld [vmem:[%s7] sm:$0x1f]
      %v747 = vld [vmem:[%s6] sm:$0xff]
      %v748 = vld [vmem:[%s6 + $0x8] sm:$0xff]
      %v749 = vld [vmem:[%s8] sm:$0x1f]
      %751 = vset.pattern.permute.xlu0 0
      %752 = vperm.xlu0 %751, %v749
      %v753 = vpop.permute.xlu0 %752
      %v756 = vsel %vm671, %v746, 0
      %758 = vmatprep.subr.mxu0 0.0
      %759 = vmatpush1.msra.mxu0 0.0
      %760 = vmatprep.subr.mxu0 0.0
      %761 = vmatpush1.msra.mxu0 0.0
      %762 = vmatprep.subr.mxu0 0.0
      %763 = vmatpush1.msra.mxu0 0.0
      %764 = vmatprep.subr.mxu0 0.0
      %765 = vmatpush1.msra.mxu0 0.0
      %766 = vmatprep.subr.mxu0 0.0
      %767 = vmatpush1.msra.mxu0 0.0
      %768 = vmatprep.subr.mxu0 0.0
      %769 = vmatpush1.msra.mxu0 0.0
      %770 = vmatprep.subr.mxu0 0.0
      %771 = vmatpush1.msra.mxu0 0.0
      %772 = vmatprep.subr.mxu0 0.0
      %773 = vmatpush1.msra.mxu0 0.0
      %774 = vmatprep.subr.mxu0 0.0
      %775 = vmatpush1.msra.mxu0 0.0
      %776 = vmatprep.subr.mxu0 0.0
      %777 = vmatpush1.msra.mxu0 0.0
      %778 = vmatprep.subr.mxu0 0.0
      %779 = vmatpush1.msra.mxu0 0.0
      %780 = vmatprep.subr.mxu0 0.0
      %781 = vmatpush1.msra.mxu0 0.0
      %782 = vmatprep.subr.mxu0 0.0
      %783 = vmatpush1.msra.mxu0 0.0
      %784 = vmatprep.subr.mxu0 0.0
      %785 = vmatpush1.msra.mxu0 0.0
      %786 = vmatprep.subr.mxu0 0.0
      %787 = vmatpush1.msra.mxu0 %v748
      %788 = vmatprep.subr.mxu0 0.0
      %789 = vmatpush1.msra.mxu0 %v747
      %790 = vmatprep.subr.mxu0 0.0
      %791 = vmatpush2.msra.mxu0 0.0
      %792 = vmatprep.subr.mxu0 0.0
      %793 = vmatpush2.msra.mxu0 0.0
      %794 = vmatprep.subr.mxu0 0.0
      %795 = vmatpush2.msra.mxu0 0.0
      %796 = vmatprep.subr.mxu0 0.0
      %797 = vmatpush2.msra.mxu0 0.0
      %798 = vmatprep.subr.mxu0 0.0
      %799 = vmatpush2.msra.mxu0 0.0
      %800 = vmatprep.subr.mxu0 0.0
      %801 = vmatpush2.msra.mxu0 0.0
      %802 = vmatprep.subr.mxu0 0.0
      %803 = vmatpush2.msra.mxu0 0.0
      %804 = vmatprep.subr.mxu0 0.0
      %805 = vmatpush2.msra.mxu0 0.0
      %806 = vmatprep.subr.mxu0 0.0
      %807 = vmatpush2.msra.mxu0 0.0
      %808 = vmatprep.subr.mxu0 0.0
      %809 = vmatpush2.msra.mxu0 0.0
      %810 = vmatprep.subr.mxu0 0.0
      %811 = vmatpush2.msra.mxu0 0.0
      %812 = vmatprep.subr.mxu0 0.0
      %813 = vmatpush2.msra.mxu0 0.0
      %814 = vmatprep.subr.mxu0 0.0
      %815 = vmatpush2.msra.mxu0 0.0
      %816 = vmatprep.subr.mxu0 0.0
      %817 = vmatpush2.msra.mxu0 0.0
      %818 = vmatprep.subr.mxu0 0.0
      %819 = vmatpush2.msra.mxu0 0.0
      %820 = vmatprep.subr.mxu0 0.0
      %821 = vmatpush2.msra.mxu0 0.0
      %822 = vmatprep.mubr.f32.mxu0 0.0
      %823 = vmatmul.mubr.f32.gmra.mxu0 %v756
      %v824 = vpop.f32.mrf.mxu0
      %v825 = vadd.f32 %v753, %v824
      %v826 = vpop.f32.mrf.mxu0
      %827 = vdwg.mxu0
      %v828 = vmax.f32 %v825, 0.0
      %v829 = vld [vmem:[%s9] sm:$0xff]
      %v830 = vld [vmem:[%s9 + $0x8] sm:$0x3]
      %v831 = vld [vmem:[%s10] sm:$0x1]
      %v833 = vlaneseq
      %v834 = vshrl.u32 %v833, 7
      %v835 = vsub.s32 0, %v834
      %v836 = vrot.slane %v831, %v835
      %vm838 = vcmask 80896
      %v840 = vsel %vm838, %v828, 0
      %vm842 = vcmask 1041408
      %v844 = vsel %vm842, %v830, 0
      %846 = vmatprep.subr.mxu0 0.0
      %847 = vmatpush1.msra.mxu0 0.0
      %848 = vmatprep.subr.mxu0 0.0
      %849 = vmatpush1.msra.mxu0 0.0
      %850 = vmatprep.subr.mxu0 0.0
      %851 = vmatpush1.msra.mxu0 0.0
      %852 = vmatprep.subr.mxu0 0.0
      %853 = vmatpush1.msra.mxu0 0.0
      %854 = vmatprep.subr.mxu0 0.0
      %855 = vmatpush1.msra.mxu0 0.0
      %856 = vmatprep.subr.mxu0 0.0
      %857 = vmatpush1.msra.mxu0 0.0
      %858 = vmatprep.subr.mxu0 0.0
      %859 = vmatpush1.msra.mxu0 0.0
      %860 = vmatprep.subr.mxu0 0.0
      %861 = vmatpush1.msra.mxu0 0.0
      %862 = vmatprep.subr.mxu0 0.0
      %863 = vmatpush1.msra.mxu0 0.0
      %864 = vmatprep.subr.mxu0 0.0
      %865 = vmatpush1.msra.mxu0 0.0
      %866 = vmatprep.subr.mxu0 0.0
      %867 = vmatpush1.msra.mxu0 0.0
      %868 = vmatprep.subr.mxu0 0.0
      %869 = vmatpush1.msra.mxu0 0.0
      %870 = vmatprep.subr.mxu0 0.0
      %871 = vmatpush1.msra.mxu0 0.0
      %872 = vmatprep.subr.mxu0 0.0
      %873 = vmatpush1.msra.mxu0 0.0
      %874 = vmatprep.subr.mxu0 0.0
      %875 = vmatpush1.msra.mxu0 %v844
      %876 = vmatprep.subr.mxu0 0.0
      %877 = vmatpush1.msra.mxu0 %v829
      %878 = vmatprep.subr.mxu0 0.0
      %879 = vmatpush2.msra.mxu0 0.0
      %880 = vmatprep.subr.mxu0 0.0
      %881 = vmatpush2.msra.mxu0 0.0
      %882 = vmatprep.subr.mxu0 0.0
      %883 = vmatpush2.msra.mxu0 0.0
      %884 = vmatprep.subr.mxu0 0.0
      %885 = vmatpush2.msra.mxu0 0.0
      %886 = vmatprep.subr.mxu0 0.0
      %887 = vmatpush2.msra.mxu0 0.0
      %888 = vmatprep.subr.mxu0 0.0
      %889 = vmatpush2.msra.mxu0 0.0
      %890 = vmatprep.subr.mxu0 0.0
      %891 = vmatpush2.msra.mxu0 0.0
      %892 = vmatprep.subr.mxu0 0.0
      %893 = vmatpush2.msra.mxu0 0.0
      %894 = vmatprep.subr.mxu0 0.0
      %895 = vmatpush2.msra.mxu0 0.0
      %896 = vmatprep.subr.mxu0 0.0
      %897 = vmatpush2.msra.mxu0 0.0
      %898 = vmatprep.subr.mxu0 0.0
      %899 = vmatpush2.msra.mxu0 0.0
      %900 = vmatprep.subr.mxu0 0.0
      %901 = vmatpush2.msra.mxu0 0.0
      %902 = vmatprep.subr.mxu0 0.0
      %903 = vmatpush2.msra.mxu0 0.0
      %904 = vmatprep.subr.mxu0 0.0
      %905 = vmatpush2.msra.mxu0 0.0
      %906 = vmatprep.subr.mxu0 0.0
      %907 = vmatpush2.msra.mxu0 0.0
      %908 = vmatprep.subr.mxu0 0.0
      %909 = vmatpush2.msra.mxu0 0.0
      %910 = vmatprep.mubr.f32.mxu0 0.0
      %911 = vmatmul.mubr.f32.gmra.mxu0 %v840
      %v912 = vpop.f32.mrf.mxu0
      %v913 = vadd.f32 %v836, %v912
      %v914 = vpop.f32.mrf.mxu0
      %915 = vdwg.mxu0
      %v916 = vmax.f32 %v913, 0.0
      %v917 = vadd.f32 %v916, %v745
      %v918 = vmax.f32 %v917, 0.0
      %vm919 = vcmask 77824
      %920 = vst.msk [vmem:[%s404] sm:$0x1f] %vm919, %v918
      %p921 = scmp.lt.s32.totalorder %s22, 1
      %s922 = scalar_select %p921, %s22, 1
      %s923 = smul.addr %s922, 8
      %s924 = scalar_lea.vmem %s11, %s923
      // Predicated region
      $region65: #{tpu_custom_call.1} parent=63 // pred_check
        %p925 = pneg %p281
      $region66: #{tpu_custom_call.1} parent=63 // pred_check_branch
        %927 = sbr.rel (%p925) target = $region68
      $region67: #{tpu_custom_call.1} parent=63 // pred_region
        _
      $region68: #{tpu_custom_call.1} parent=63 // pred_fallthru
        _
    $region64: #{tpu_custom_call.1} parent=5 // pred_fallthru
      _
    %p928 = scmp.le.s32.totalorder 2, %s17
    // Predicated region
    $region69: #{tpu_custom_call.1} parent=5 // pred_check
      %p929 = pneg %p928
    $region70: #{tpu_custom_call.1} parent=5 // pred_check_branch
      %931 = sbr.rel (%p929) target = $region72
    $region71: #{tpu_custom_call.1} parent=5 // pred_region
      %s932 = ssub.s32 %s17, 2
      // Predicated region
      $region73: #{tpu_custom_call.1} parent=71 // pred_check
        %p933 = pneg %p287
      $region74: #{tpu_custom_call.1} parent=71 // pred_check_branch
        %935 = sbr.rel (%p933) target = $region76
      $region75: #{tpu_custom_call.1} parent=71 // pred_region
        %p936 = scmp.lt.s32.totalorder %s23, 1
        %s937 = scalar_select %p936, %s23, 1
        %s938 = smul.addr %s937, 8
        %s939 = scalar_lea.vmem %s11, %s938
      $region76: #{tpu_custom_call.1} parent=71 // pred_fallthru
        _
    $region72: #{tpu_custom_call.1} parent=5 // pred_fallthru
      _
  $region6: #{tpu_custom_call.1} parent=0 // loop_footer
    %s21 = sadd.s32 1, %s17
  $region7: #{tpu_custom_call.1} parent=0 // loop_footer_branch
    %16 = sbr.rel target = $region3
  $region8: #{tpu_custom_call.1} parent=0 // loop_exit
    _

</llo_original>
